<compile_context>
chip_gen: v5e
topology: v5e:2x2
jax: 0.10.0
libtpu: 0.0.40
codegen_flags: <defaults>
</compile_context>

<pallas_src>
import functools

import jax
import jax.numpy as jnp
from jax.experimental import pallas as pl
from jax.experimental.pallas import tpu as pltpu


def _round_up(x, m):
    return ((x + m - 1) // m) * m


def _vmem_budget_bytes():
    """Generation-aware scoped-VMEM budget (~75% of physical VMEM per TensorCore)."""
    cap = None
    try:
        cap = getattr(pltpu.get_tpu_info(), "vmem_capacity_bytes", None)
    except Exception:
        cap = None
    if not cap:
        cap = 64 << 20          # conservative fallback: v7x has 64 MiB per TensorCore
    return int(cap) * 3 // 4    # ~48 MiB on v7x, ~96 MiB on v5e / v6e


# ----------------------------- Pallas kernel --------------------------------
def _sa_mlp_maxpool_kernel(n_layers, n_samples, unroll, x_ref, *refs):
    """One (batch, npoint-tile) output tile; full nsample reduction done in-kernel.

    x_ref : (nsample, Cin, tile_p) bf16 grouped features (points on the lane axis)
    refs  : w_0, b_0, ..., w_{L-1}, b_{L-1}, o_ref
            w_l : (C_{l+1}, C_l) bf16  transposed 1x1-conv weights (BN scale folded)
            b_l : (C_{l+1}, 1)   f32   folded BN bias
    o_ref : (C_out, tile_p) f32 channel-first output tile (lane-dense npoint axis)
    """
    o_ref = refs[2 * n_layers]
    ws = [refs[2 * l][...] for l in range(n_layers)]        # small, loop-invariant loads
    bs = [refs[2 * l + 1][...] for l in range(n_layers)]
    c_out, tile_p = o_ref.shape

    def body(s, acc):
        h = x_ref[s]                                         # (Cin, tile_p) bf16
        for w, b in zip(ws, bs):
            h = jnp.dot(w, h.astype(w.dtype), preferred_element_type=jnp.float32)
            h = jnp.maximum(h + b, 0.0)                      # (C_l, tile_p) f32, lane-dense
        return jnp.maximum(acc, h)                           # running max over samples

    acc0 = jnp.full((c_out, tile_p), -jnp.inf, dtype=jnp.float32)
    acc = jax.lax.fori_loop(0, n_samples, body, acc0, unroll=unroll)
    o_ref[...] = acc


def sa_mlp_maxpool(grouped, params):
    """grouped: (B, nsample, Cin, P_pad) bf16, P_pad % 128 == 0.
    params: list of (w (C_in_l, C_out_l) f32, b (C_out_l,) f32) with BN already folded.
    Returns (B, C_out_last, P_pad) f32, channel-first."""
    B, S, Cin, P_pad = grouped.shape
    n_layers = len(params)
    assert params[0][0].shape[0] == Cin
    c_outs = [w.shape[1] for w, _ in params]
    c_ins = [Cin] + c_outs[:-1]
    c_out = c_outs[-1]

    # ---- generation-aware tile sizing --------------------------------------
    budget = _vmem_budget_bytes()
    s_r = _round_up(S, 16)                                   # bf16 sublane packing
    cin_r = _round_up(Cin, 16)
    per_point = 2 * s_r * cin_r * 2                          # x block, double-buffered bf16
    per_point += sum(_round_up(c, 8) for c in c_outs) * 4 * 2   # layer intermediates (f32)
    per_point += _round_up(c_out, 8) * 4 * 3                 # acc + double-buffered out
    w_bytes = sum(_round_up(co, 16) * _round_up(ci, 128) * 2 + _round_up(co, 8) * 128 * 4
                  for ci, co in zip(c_ins, c_outs)) * 2
    headroom = 6 << 20
    avail = max(budget - headroom - w_bytes, 1 << 20)

    n128 = P_pad // 128
    cands = [128 * d for d in range(n128, 0, -1) if n128 % d == 0 and 128 * d <= 2048]
    if not cands:
        cands = [128]
    tile_p = next((tp for tp in cands if per_point * tp <= avail), cands[-1])
    # v7x megacore: keep at least two parallel grid tiles in flight when possible.
    while B * (P_pad // tile_p) < 2:
        smaller = [tp for tp in cands if tp < tile_p]
        if not smaller:
            break
        tile_p = smaller[0]
    vmem_limit = int(min(budget, max(per_point * tile_p + w_bytes + headroom, 32 << 20)))

    # ---- operands / specs ----------------------------------------------------
    ops, wb_specs = [], []
    for (w, b), ci, co in zip(params, c_ins, c_outs):
        ops.append(jnp.asarray(w, jnp.float32).T.astype(jnp.bfloat16))   # (co, ci)
        ops.append(jnp.asarray(b, jnp.float32).reshape(co, 1))
        wb_specs.append(pl.BlockSpec((co, ci), lambda b_, p_: (0, 0)))
        wb_specs.append(pl.BlockSpec((co, 1), lambda b_, p_: (0, 0)))

    unroll = bool(S * n_layers <= 48)
    kernel = functools.partial(_sa_mlp_maxpool_kernel, n_layers, S, unroll)

    return pl.pallas_call(
        kernel,
        out_shape=jax.ShapeDtypeStruct((B, c_out, P_pad), jnp.float32),
        grid=(B, P_pad // tile_p),
        in_specs=[pl.BlockSpec((None, S, Cin, tile_p), lambda b_, p_: (b_, 0, 0, p_))]
                + wb_specs,
        out_specs=pl.BlockSpec((None, c_out, tile_p), lambda b_, p_: (b_, 0, p_)),
        compiler_params=pltpu.CompilerParams(
            dimension_semantics=("parallel", "parallel"),
            vmem_limit_bytes=vmem_limit),
    )(grouped, *ops)


# ------------------------------- JAX glue ------------------------------------
def calc_square_dist(a, b):
    """a: (B, n, c), b: (B, m, c) -> (B, n, m) squared distances."""
    a_sq = jnp.sum(a * a, axis=-1, keepdims=True)
    b_sq = jnp.sum(b * b, axis=-1, keepdims=True).transpose(0, 2, 1)
    coor = jnp.einsum('bnc,bmc->bnm', a, b)
    return a_sq + b_sq - 2.0 * coor


def furthest_point_sample(xyz, npoint):
    """xyz: (B, N, 3) -> (B, npoint) int32 indices (deterministic start at 0)."""
    B, N, _ = xyz.shape

    def body(i, state):
        idxs, dist, farthest = state
        idxs = idxs.at[:, i].set(farthest)
        centroid = jnp.take_along_axis(xyz, farthest[:, None, None], axis=1)
        d = jnp.sum((xyz - centroid) ** 2, axis=-1)
        dist = jnp.minimum(dist, d)
        farthest = jnp.argmax(dist, axis=-1).astype(jnp.int32)
        return idxs, dist, farthest

    idxs0 = jnp.zeros((B, npoint), jnp.int32)
    dist0 = jnp.full((B, N), 1e10, jnp.float32)
    far0 = jnp.zeros((B,), jnp.int32)
    idxs, _, _ = jax.lax.fori_loop(0, npoint, body, (idxs0, dist0, far0))
    return idxs


def ball_query(radius, nsample, xyz, new_xyz):
    """First `nsample` in-radius indices (index order); remaining slots replicate the first."""
    B, N, _ = xyz.shape
    # NOTE: a^2 + b^2 - 2ab in f32 can differ at the radius boundary vs. the CUDA (x-y)^2 kernel.
    dist = calc_square_dist(new_xyz, xyz)
    in_ball = dist < radius ** 2
    arange = jnp.arange(N, dtype=jnp.int32)
    key = jnp.where(in_ball, arange[None, None, :], N)
    order = jnp.argsort(key, axis=-1)[:, :, :nsample].astype(jnp.int32)
    key_sorted = jnp.take_along_axis(key, order, axis=-1)
    valid = key_sorted < N
    first = order[:, :, :1]
    return jnp.where(valid, order, first)                              # (B, P, nsample)


def gather_points(points, idx):
    """points: (B, N, C), idx: (B, ...) -> (B, ..., C)."""
    return jax.vmap(lambda p, i: p[i])(points, idx)


def query_and_group_cf(radius, nsample, xyz, new_xyz, features):
    """QueryAndGroup(use_xyz=True) emitted directly in the kernel layout
    (B, nsample, 3 + C, npoint): intentionally bf16, points on the minor (lane) axis."""
    B, N, _ = xyz.shape
    C = features.shape[-1]
    P = new_xyz.shape[1]
    idx = ball_query(radius, nsample, xyz, new_xyz)                    # (B, P, S)
    idx_t = jnp.transpose(idx, (0, 2, 1))                              # (B, S, P)  (tiny)
    points_cf = jnp.concatenate([jnp.transpose(xyz, (0, 2, 1)),
                                 jnp.transpose(features, (0, 2, 1))], axis=1)   # (B, 3+C, N)
    grouped = jax.vmap(lambda p, i: p[:, i])(points_cf, idx_t)          # (B, 3+C, S, P)
    offset = jnp.concatenate([jnp.transpose(new_xyz, (0, 2, 1)),
                              jnp.zeros((B, C, P), xyz.dtype)], axis=1)  # (B, 3+C, P)
    # Center-subtract the xyz channels, cast to bf16 and move the sample axis out front in
    # one fused elementwise/copy pass (the minor point axis is preserved).
    grouped = (grouped - offset[:, :, None, :]).astype(jnp.bfloat16)
    return jnp.transpose(grouped, (0, 2, 1, 3))                          # (B, S, 3+C, P)


def fold_bn(gamma, beta, mean, var, eps=1e-5):
    s = gamma / jnp.sqrt(var + eps)
    return s, beta - mean * s


def init_grouper_params(key, channels):
    """Conv2d(1x1, bias=False)+BN+ReLU stack; BN folded, scale merged into the conv weights.
    Returns [(w (C_in, C_out) f32, b (C_out,) f32), ...]."""
    params = []
    keys = jax.random.split(key, len(channels) - 1)
    for k, cin, cout in zip(keys, channels[:-1], channels[1:]):
        kw, kg, kb = jax.random.split(k, 3)
        w = jax.random.normal(kw, (cin, cout), jnp.float32) * 0.2
        gamma = 1.0 + 0.1 * jax.random.normal(kg, (cout,), jnp.float32)
        beta = 0.1 * jax.random.normal(kb, (cout,), jnp.float32)
        s, b = fold_bn(gamma, beta, jnp.zeros((cout,)), jnp.ones((cout,)))
        params.append((w * s[None, :], b))                   # x @ (w*s) + b == BN(x @ w)
    return params


def pointnet_sa_forward(xyz, features, npoint, radii, nsamples, params_list):
    """Mirrors PointnetSAModuleMSG_SSD.forward (D-FPS, max_pool, out_channle == -1).

    Returns:
      new_xyz:      (B, npoint, 3)
      new_features: (B, sum_k C_out_k, npoint)   (PyTorch channel-first convention)
    """
    B, N, _ = xyz.shape
    P = npoint
    P_pad = _round_up(max(P, 128), 128)          # lane-dense output tiles / unmasked stores

    fps_idx = furthest_point_sample(xyz, P)                            # (B, P)
    if P_pad != P:                                                     # pad indices, not tensors
        fps_idx = jnp.pad(fps_idx, ((0, 0), (0, P_pad - P)), mode="edge")
    new_xyz_pad = gather_points(xyz, fps_idx)                          # (B, P_pad, 3)

    outs = []
    for radius, nsample, prm in zip(radii, nsamples, params_list):
        grouped = query_and_group_cf(radius, nsample, xyz, new_xyz_pad, features)
        outs.append(sa_mlp_maxpool(grouped, prm))                      # (B, C_out, P_pad)
    new_features = jnp.concatenate(outs, axis=1)[:, :, :P]
    return new_xyz_pad[:, :P, :], new_features


def _reference_mlp_maxpool(grouped, params):
    """Pure-JAX reference of the kernel hot path (same bf16-in / f32-accumulate recipe).
    grouped: (B, S, Cin, P) bf16 -> (B, C_out, P) f32."""
    h = grouped
    for w, b in params:
        wt = jnp.asarray(w, jnp.float32).T.astype(jnp.bfloat16)
        h = jnp.einsum('oc,bscp->bsop', wt, h.astype(jnp.bfloat16),
                       preferred_element_type=jnp.float32)
        h = jnp.maximum(h + b.reshape(1, 1, -1, 1), 0.0)
    return jnp.max(h, axis=1)                                           # (B, C_out, P)


if __name__ == "__main__":
    key = jax.random.PRNGKey(0)
    B, N, C = 2, 64, 4
    npoint = 16
    radii = [0.8, 1.6]
    nsamples = [8, 16]
    mlp_channels = [[3 + C, 16, 32], [3 + C, 16, 24, 32]]   # 2-layer and 3-layer MLP scales

    k_xyz, k_feat, k_p0, k_p1 = jax.random.split(key, 4)
    xyz = jax.random.normal(k_xyz, (B, N, 3), jnp.float32)
    features = jax.random.normal(k_feat, (B, N, C), jnp.float32)

    params_list = [init_grouper_params(k_p0, mlp_channels[0]),
                   init_grouper_params(k_p1, mlp_channels[1])]

    new_xyz, new_features = pointnet_sa_forward(
        xyz, features, npoint, radii, nsamples, params_list)
    jax.block_until_ready((new_xyz, new_features))

    # correctness check of the Pallas hot path against a pure-JAX reference
    P_pad = _round_up(max(npoint, 128), 128)
    fps_idx = furthest_point_sample(xyz, npoint)
    fps_idx = jnp.pad(fps_idx, ((0, 0), (0, P_pad - npoint)), mode="edge")
    nx_pad = gather_points(xyz, fps_idx)
    refs = []
    for radius, nsample, prm in zip(radii, nsamples, params_list):
        grouped = query_and_group_cf(radius, nsample, xyz, nx_pad, features)
        refs.append(_reference_mlp_maxpool(grouped, prm))
    ref_feats = jnp.concatenate(refs, axis=1)[:, :, :npoint]

    assert new_xyz.shape == (B, npoint, 3)
    assert new_features.shape == (B, sum(m[-1] for m in mlp_channels), npoint)
    err = float(jnp.max(jnp.abs(new_features - ref_feats)))
    assert jnp.allclose(new_features, ref_feats, rtol=1e-2, atol=1e-2), err

    print("KERNEL_OK")
</pallas_src>

<mosaic_0001>
module attributes {stable_mosaic.version = 11 : i64} {
  func.func @_sa_mlp_maxpool_kernel(%arg0: i32, %arg1: i32, %arg2: memref<1x8x7x128xbf16, #tpu.memory_space<vmem>>, %arg3: memref<16x7xbf16, #tpu.memory_space<vmem>>, %arg4: memref<16x1xf32, #tpu.memory_space<vmem>>, %arg5: memref<32x16xbf16, #tpu.memory_space<vmem>>, %arg6: memref<32x1xf32, #tpu.memory_space<vmem>>, %arg7: memref<1x32x128xf32, #tpu.memory_space<vmem>>) attributes {dimension_semantics = [#tpu.dimension_semantics<parallel>, #tpu.dimension_semantics<parallel>], iteration_bounds = array<i64: 2, 1>, scalar_prefetch = 0 : i64, scratch_operands = 0 : i64, tpu.core_type = #tpu.core_type<tc>, window_params = [{transform_indices = @transform_0, window_bounds = array<i64: 1, 8, 7, 128>}, {pipeline_mode = #tpu.pipeline_mode<synchronous>, transform_indices = @transform_1, window_bounds = array<i64: 16, 7>}, {pipeline_mode = #tpu.pipeline_mode<synchronous>, transform_indices = @transform_2, window_bounds = array<i64: 16, 1>}, {pipeline_mode = #tpu.pipeline_mode<synchronous>, transform_indices = @transform_3, window_bounds = array<i64: 32, 16>}, {pipeline_mode = #tpu.pipeline_mode<synchronous>, transform_indices = @transform_4, window_bounds = array<i64: 32, 1>}, {transform_indices = @transform_5, window_bounds = array<i64: 1, 32, 128>}]} {
    %c0 = arith.constant 0 : index
    %c0_0 = arith.constant 0 : index
    %0 = vector.load %arg3[%c0, %c0_0] : memref<16x7xbf16, #tpu.memory_space<vmem>>, vector<16x7xbf16>
    %c0_1 = arith.constant 0 : index
    %c0_2 = arith.constant 0 : index
    %1 = vector.load %arg5[%c0_1, %c0_2] : memref<32x16xbf16, #tpu.memory_space<vmem>>, vector<32x16xbf16>
    %c0_3 = arith.constant 0 : index
    %c0_4 = arith.constant 0 : index
    %2 = vector.load %arg4[%c0_3, %c0_4] : memref<16x1xf32, #tpu.memory_space<vmem>>, vector<16x1xf32>
    %c0_5 = arith.constant 0 : index
    %c0_6 = arith.constant 0 : index
    %3 = vector.load %arg6[%c0_5, %c0_6] : memref<32x1xf32, #tpu.memory_space<vmem>>, vector<32x1xf32>
    %cst = arith.constant 0xFF800000 : f32
    %4 = vector.broadcast %cst : f32 to vector<32x128xf32>
    %c0_i32 = arith.constant 0 : i32
    %c0_7 = arith.constant 0 : index
    %5 = arith.index_cast %c0_i32 : i32 to index
    %c0_8 = arith.constant 0 : index
    %c0_9 = arith.constant 0 : index
    %6 = vector.load %arg2[%c0_7, %5, %c0_8, %c0_9] : memref<1x8x7x128xbf16, #tpu.memory_space<vmem>>, vector<1x1x7x128xbf16>
    %7 = vector.shape_cast %6 : vector<1x1x7x128xbf16> to vector<7x128xbf16>
    %cst_10 = arith.constant dense<0.000000e+00> : vector<16x128xf32>
    %8 = tpu.matmul %0, %7, %cst_10 {dimension_numbers = #tpu.dot_dimension_numbers<[1], [0], [0], [1], [0, 0, 1, 1], [], []>} : vector<16x7xbf16>, vector<7x128xbf16>, vector<16x128xf32> -> vector<16x128xf32>
    %9 = vector.broadcast %2 : vector<16x1xf32> to vector<16x128xf32>
    %10 = arith.addf %8, %9 : vector<16x128xf32>
    %cst_11 = arith.constant 0.000000e+00 : f32
    %11 = vector.broadcast %cst_11 : f32 to vector<16x128xf32>
    %12 = arith.maximumf %10, %11 : vector<16x128xf32>
    %13 = arith.truncf %12 : vector<16x128xf32> to vector<16x128xbf16>
    %cst_12 = arith.constant dense<0.000000e+00> : vector<32x128xf32>
    %14 = tpu.matmul %1, %13, %cst_12 {dimension_numbers = #tpu.dot_dimension_numbers<[1], [0], [0], [1], [0, 0, 1, 1], [], []>} : vector<32x16xbf16>, vector<16x128xbf16>, vector<32x128xf32> -> vector<32x128xf32>
    %15 = vector.broadcast %3 : vector<32x1xf32> to vector<32x128xf32>
    %16 = arith.addf %14, %15 : vector<32x128xf32>
    %cst_13 = arith.constant 0.000000e+00 : f32
    %17 = vector.broadcast %cst_13 : f32 to vector<32x128xf32>
    %18 = arith.maximumf %16, %17 : vector<32x128xf32>
    %19 = arith.maximumf %4, %18 : vector<32x128xf32>
    %c1_i32 = arith.constant 1 : i32
    %c0_14 = arith.constant 0 : index
    %20 = arith.index_cast %c1_i32 : i32 to index
    %c0_15 = arith.constant 0 : index
    %c0_16 = arith.constant 0 : index
    %21 = vector.load %arg2[%c0_14, %20, %c0_15, %c0_16] : memref<1x8x7x128xbf16, #tpu.memory_space<vmem>>, vector<1x1x7x128xbf16>
    %22 = vector.shape_cast %21 : vector<1x1x7x128xbf16> to vector<7x128xbf16>
    %cst_17 = arith.constant dense<0.000000e+00> : vector<16x128xf32>
    %23 = tpu.matmul %0, %22, %cst_17 {dimension_numbers = #tpu.dot_dimension_numbers<[1], [0], [0], [1], [0, 0, 1, 1], [], []>} : vector<16x7xbf16>, vector<7x128xbf16>, vector<16x128xf32> -> vector<16x128xf32>
    %24 = vector.broadcast %2 : vector<16x1xf32> to vector<16x128xf32>
    %25 = arith.addf %23, %24 : vector<16x128xf32>
    %cst_18 = arith.constant 0.000000e+00 : f32
    %26 = vector.broadcast %cst_18 : f32 to vector<16x128xf32>
    %27 = arith.maximumf %25, %26 : vector<16x128xf32>
    %28 = arith.truncf %27 : vector<16x128xf32> to vector<16x128xbf16>
    %cst_19 = arith.constant dense<0.000000e+00> : vector<32x128xf32>
    %29 = tpu.matmul %1, %28, %cst_19 {dimension_numbers = #tpu.dot_dimension_numbers<[1], [0], [0], [1], [0, 0, 1, 1], [], []>} : vector<32x16xbf16>, vector<16x128xbf16>, vector<32x128xf32> -> vector<32x128xf32>
    %30 = vector.broadcast %3 : vector<32x1xf32> to vector<32x128xf32>
    %31 = arith.addf %29, %30 : vector<32x128xf32>
    %cst_20 = arith.constant 0.000000e+00 : f32
    %32 = vector.broadcast %cst_20 : f32 to vector<32x128xf32>
    %33 = arith.maximumf %31, %32 : vector<32x128xf32>
    %34 = arith.maximumf %19, %33 : vector<32x128xf32>
    %c2_i32 = arith.constant 2 : i32
    %c0_21 = arith.constant 0 : index
    %35 = arith.index_cast %c2_i32 : i32 to index
    %c0_22 = arith.constant 0 : index
    %c0_23 = arith.constant 0 : index
    %36 = vector.load %arg2[%c0_21, %35, %c0_22, %c0_23] : memref<1x8x7x128xbf16, #tpu.memory_space<vmem>>, vector<1x1x7x128xbf16>
    %37 = vector.shape_cast %36 : vector<1x1x7x128xbf16> to vector<7x128xbf16>
    %cst_24 = arith.constant dense<0.000000e+00> : vector<16x128xf32>
    %38 = tpu.matmul %0, %37, %cst_24 {dimension_numbers = #tpu.dot_dimension_numbers<[1], [0], [0], [1], [0, 0, 1, 1], [], []>} : vector<16x7xbf16>, vector<7x128xbf16>, vector<16x128xf32> -> vector<16x128xf32>
    %39 = vector.broadcast %2 : vector<16x1xf32> to vector<16x128xf32>
    %40 = arith.addf %38, %39 : vector<16x128xf32>
    %cst_25 = arith.constant 0.000000e+00 : f32
    %41 = vector.broadcast %cst_25 : f32 to vector<16x128xf32>
    %42 = arith.maximumf %40, %41 : vector<16x128xf32>
    %43 = arith.truncf %42 : vector<16x128xf32> to vector<16x128xbf16>
    %cst_26 = arith.constant dense<0.000000e+00> : vector<32x128xf32>
    %44 = tpu.matmul %1, %43, %cst_26 {dimension_numbers = #tpu.dot_dimension_numbers<[1], [0], [0], [1], [0, 0, 1, 1], [], []>} : vector<32x16xbf16>, vector<16x128xbf16>, vector<32x128xf32> -> vector<32x128xf32>
    %45 = vector.broadcast %3 : vector<32x1xf32> to vector<32x128xf32>
    %46 = arith.addf %44, %45 : vector<32x128xf32>
    %cst_27 = arith.constant 0.000000e+00 : f32
    %47 = vector.broadcast %cst_27 : f32 to vector<32x128xf32>
    %48 = arith.maximumf %46, %47 : vector<32x128xf32>
    %49 = arith.maximumf %34, %48 : vector<32x128xf32>
    %c3_i32 = arith.constant 3 : i32
    %c0_28 = arith.constant 0 : index
    %50 = arith.index_cast %c3_i32 : i32 to index
    %c0_29 = arith.constant 0 : index
    %c0_30 = arith.constant 0 : index
    %51 = vector.load %arg2[%c0_28, %50, %c0_29, %c0_30] : memref<1x8x7x128xbf16, #tpu.memory_space<vmem>>, vector<1x1x7x128xbf16>
    %52 = vector.shape_cast %51 : vector<1x1x7x128xbf16> to vector<7x128xbf16>
    %cst_31 = arith.constant dense<0.000000e+00> : vector<16x128xf32>
    %53 = tpu.matmul %0, %52, %cst_31 {dimension_numbers = #tpu.dot_dimension_numbers<[1], [0], [0], [1], [0, 0, 1, 1], [], []>} : vector<16x7xbf16>, vector<7x128xbf16>, vector<16x128xf32> -> vector<16x128xf32>
    %54 = vector.broadcast %2 : vector<16x1xf32> to vector<16x128xf32>
    %55 = arith.addf %53, %54 : vector<16x128xf32>
    %cst_32 = arith.constant 0.000000e+00 : f32
    %56 = vector.broadcast %cst_32 : f32 to vector<16x128xf32>
    %57 = arith.maximumf %55, %56 : vector<16x128xf32>
    %58 = arith.truncf %57 : vector<16x128xf32> to vector<16x128xbf16>
    %cst_33 = arith.constant dense<0.000000e+00> : vector<32x128xf32>
    %59 = tpu.matmul %1, %58, %cst_33 {dimension_numbers = #tpu.dot_dimension_numbers<[1], [0], [0], [1], [0, 0, 1, 1], [], []>} : vector<32x16xbf16>, vector<16x128xbf16>, vector<32x128xf32> -> vector<32x128xf32>
    %60 = vector.broadcast %3 : vector<32x1xf32> to vector<32x128xf32>
    %61 = arith.addf %59, %60 : vector<32x128xf32>
    %cst_34 = arith.constant 0.000000e+00 : f32
    %62 = vector.broadcast %cst_34 : f32 to vector<32x128xf32>
    %63 = arith.maximumf %61, %62 : vector<32x128xf32>
    %64 = arith.maximumf %49, %63 : vector<32x128xf32>
    %c4_i32 = arith.constant 4 : i32
    %c0_35 = arith.constant 0 : index
    %65 = arith.index_cast %c4_i32 : i32 to index
    %c0_36 = arith.constant 0 : index
    %c0_37 = arith.constant 0 : index
    %66 = vector.load %arg2[%c0_35, %65, %c0_36, %c0_37] : memref<1x8x7x128xbf16, #tpu.memory_space<vmem>>, vector<1x1x7x128xbf16>
    %67 = vector.shape_cast %66 : vector<1x1x7x128xbf16> to vector<7x128xbf16>
    %cst_38 = arith.constant dense<0.000000e+00> : vector<16x128xf32>
    %68 = tpu.matmul %0, %67, %cst_38 {dimension_numbers = #tpu.dot_dimension_numbers<[1], [0], [0], [1], [0, 0, 1, 1], [], []>} : vector<16x7xbf16>, vector<7x128xbf16>, vector<16x128xf32> -> vector<16x128xf32>
    %69 = vector.broadcast %2 : vector<16x1xf32> to vector<16x128xf32>
    %70 = arith.addf %68, %69 : vector<16x128xf32>
    %cst_39 = arith.constant 0.000000e+00 : f32
    %71 = vector.broadcast %cst_39 : f32 to vector<16x128xf32>
    %72 = arith.maximumf %70, %71 : vector<16x128xf32>
    %73 = arith.truncf %72 : vector<16x128xf32> to vector<16x128xbf16>
    %cst_40 = arith.constant dense<0.000000e+00> : vector<32x128xf32>
    %74 = tpu.matmul %1, %73, %cst_40 {dimension_numbers = #tpu.dot_dimension_numbers<[1], [0], [0], [1], [0, 0, 1, 1], [], []>} : vector<32x16xbf16>, vector<16x128xbf16>, vector<32x128xf32> -> vector<32x128xf32>
    %75 = vector.broadcast %3 : vector<32x1xf32> to vector<32x128xf32>
    %76 = arith.addf %74, %75 : vector<32x128xf32>
    %cst_41 = arith.constant 0.000000e+00 : f32
    %77 = vector.broadcast %cst_41 : f32 to vector<32x128xf32>
    %78 = arith.maximumf %76, %77 : vector<32x128xf32>
    %79 = arith.maximumf %64, %78 : vector<32x128xf32>
    %c5_i32 = arith.constant 5 : i32
    %c0_42 = arith.constant 0 : index
    %80 = arith.index_cast %c5_i32 : i32 to index
    %c0_43 = arith.constant 0 : index
    %c0_44 = arith.constant 0 : index
    %81 = vector.load %arg2[%c0_42, %80, %c0_43, %c0_44] : memref<1x8x7x128xbf16, #tpu.memory_space<vmem>>, vector<1x1x7x128xbf16>
    %82 = vector.shape_cast %81 : vector<1x1x7x128xbf16> to vector<7x128xbf16>
    %cst_45 = arith.constant dense<0.000000e+00> : vector<16x128xf32>
    %83 = tpu.matmul %0, %82, %cst_45 {dimension_numbers = #tpu.dot_dimension_numbers<[1], [0], [0], [1], [0, 0, 1, 1], [], []>} : vector<16x7xbf16>, vector<7x128xbf16>, vector<16x128xf32> -> vector<16x128xf32>
    %84 = vector.broadcast %2 : vector<16x1xf32> to vector<16x128xf32>
    %85 = arith.addf %83, %84 : vector<16x128xf32>
    %cst_46 = arith.constant 0.000000e+00 : f32
    %86 = vector.broadcast %cst_46 : f32 to vector<16x128xf32>
    %87 = arith.maximumf %85, %86 : vector<16x128xf32>
    %88 = arith.truncf %87 : vector<16x128xf32> to vector<16x128xbf16>
    %cst_47 = arith.constant dense<0.000000e+00> : vector<32x128xf32>
    %89 = tpu.matmul %1, %88, %cst_47 {dimension_numbers = #tpu.dot_dimension_numbers<[1], [0], [0], [1], [0, 0, 1, 1], [], []>} : vector<32x16xbf16>, vector<16x128xbf16>, vector<32x128xf32> -> vector<32x128xf32>
    %90 = vector.broadcast %3 : vector<32x1xf32> to vector<32x128xf32>
    %91 = arith.addf %89, %90 : vector<32x128xf32>
    %cst_48 = arith.constant 0.000000e+00 : f32
    %92 = vector.broadcast %cst_48 : f32 to vector<32x128xf32>
    %93 = arith.maximumf %91, %92 : vector<32x128xf32>
    %94 = arith.maximumf %79, %93 : vector<32x128xf32>
    %c6_i32 = arith.constant 6 : i32
    %c0_49 = arith.constant 0 : index
    %95 = arith.index_cast %c6_i32 : i32 to index
    %c0_50 = arith.constant 0 : index
    %c0_51 = arith.constant 0 : index
    %96 = vector.load %arg2[%c0_49, %95, %c0_50, %c0_51] : memref<1x8x7x128xbf16, #tpu.memory_space<vmem>>, vector<1x1x7x128xbf16>
    %97 = vector.shape_cast %96 : vector<1x1x7x128xbf16> to vector<7x128xbf16>
    %cst_52 = arith.constant dense<0.000000e+00> : vector<16x128xf32>
    %98 = tpu.matmul %0, %97, %cst_52 {dimension_numbers = #tpu.dot_dimension_numbers<[1], [0], [0], [1], [0, 0, 1, 1], [], []>} : vector<16x7xbf16>, vector<7x128xbf16>, vector<16x128xf32> -> vector<16x128xf32>
    %99 = vector.broadcast %2 : vector<16x1xf32> to vector<16x128xf32>
    %100 = arith.addf %98, %99 : vector<16x128xf32>
    %cst_53 = arith.constant 0.000000e+00 : f32
    %101 = vector.broadcast %cst_53 : f32 to vector<16x128xf32>
    %102 = arith.maximumf %100, %101 : vector<16x128xf32>
    %103 = arith.truncf %102 : vector<16x128xf32> to vector<16x128xbf16>
    %cst_54 = arith.constant dense<0.000000e+00> : vector<32x128xf32>
    %104 = tpu.matmul %1, %103, %cst_54 {dimension_numbers = #tpu.dot_dimension_numbers<[1], [0], [0], [1], [0, 0, 1, 1], [], []>} : vector<32x16xbf16>, vector<16x128xbf16>, vector<32x128xf32> -> vector<32x128xf32>
    %105 = vector.broadcast %3 : vector<32x1xf32> to vector<32x128xf32>
    %106 = arith.addf %104, %105 : vector<32x128xf32>
    %cst_55 = arith.constant 0.000000e+00 : f32
    %107 = vector.broadcast %cst_55 : f32 to vector<32x128xf32>
    %108 = arith.maximumf %106, %107 : vector<32x128xf32>
    %109 = arith.maximumf %94, %108 : vector<32x128xf32>
    %c7_i32 = arith.constant 7 : i32
    %c0_56 = arith.constant 0 : index
    %110 = arith.index_cast %c7_i32 : i32 to index
    %c0_57 = arith.constant 0 : index
    %c0_58 = arith.constant 0 : index
    %111 = vector.load %arg2[%c0_56, %110, %c0_57, %c0_58] : memref<1x8x7x128xbf16, #tpu.memory_space<vmem>>, vector<1x1x7x128xbf16>
    %112 = vector.shape_cast %111 : vector<1x1x7x128xbf16> to vector<7x128xbf16>
    %cst_59 = arith.constant dense<0.000000e+00> : vector<16x128xf32>
    %113 = tpu.matmul %0, %112, %cst_59 {dimension_numbers = #tpu.dot_dimension_numbers<[1], [0], [0], [1], [0, 0, 1, 1], [], []>} : vector<16x7xbf16>, vector<7x128xbf16>, vector<16x128xf32> -> vector<16x128xf32>
    %114 = vector.broadcast %2 : vector<16x1xf32> to vector<16x128xf32>
    %115 = arith.addf %113, %114 : vector<16x128xf32>
    %cst_60 = arith.constant 0.000000e+00 : f32
    %116 = vector.broadcast %cst_60 : f32 to vector<16x128xf32>
    %117 = arith.maximumf %115, %116 : vector<16x128xf32>
    %118 = arith.truncf %117 : vector<16x128xf32> to vector<16x128xbf16>
    %cst_61 = arith.constant dense<0.000000e+00> : vector<32x128xf32>
    %119 = tpu.matmul %1, %118, %cst_61 {dimension_numbers = #tpu.dot_dimension_numbers<[1], [0], [0], [1], [0, 0, 1, 1], [], []>} : vector<32x16xbf16>, vector<16x128xbf16>, vector<32x128xf32> -> vector<32x128xf32>
    %120 = vector.broadcast %3 : vector<32x1xf32> to vector<32x128xf32>
    %121 = arith.addf %119, %120 : vector<32x128xf32>
    %cst_62 = arith.constant 0.000000e+00 : f32
    %122 = vector.broadcast %cst_62 : f32 to vector<32x128xf32>
    %123 = arith.maximumf %121, %122 : vector<32x128xf32>
    %124 = arith.maximumf %109, %123 : vector<32x128xf32>
    %c8_i32 = arith.constant 8 : i32
    %c0_63 = arith.constant 0 : index
    %c0_64 = arith.constant 0 : index
    %c0_65 = arith.constant 0 : index
    %125 = vector.load %arg7[%c0_63, %c0_64, %c0_65] : memref<1x32x128xf32, #tpu.memory_space<vmem>>, vector<1x32x128xf32>
    %126 = vector.shape_cast %125 : vector<1x32x128xf32> to vector<32x128xf32>
    %127 = vector.shape_cast %124 : vector<32x128xf32> to vector<1x32x128xf32>
    tpu.vector_store %arg7[%c0_63, %c0_64, %c0_65], %127 {strides = array<i32>} : memref<1x32x128xf32, #tpu.memory_space<vmem>>, vector<1x32x128xf32>,
    return
  }
  func.func @transform_0(%arg0: i32, %arg1: i32) -> (i32, i32, i32, i32) {
    %c0_i32 = arith.constant 0 : i32
    %c0_i32_0 = arith.constant 0 : i32
    %c0_i32_1 = arith.constant 0 : i32
    return %arg0, %c0_i32, %c0_i32_0, %arg1 : i32, i32, i32, i32
  }
  func.func @transform_1(%arg0: i32, %arg1: i32) -> (i32, i32) {
    %c0_i32 = arith.constant 0 : i32
    %c0_i32_0 = arith.constant 0 : i32
    %c0_i32_1 = arith.constant 0 : i32
    return %c0_i32, %c0_i32_0 : i32, i32
  }
  func.func @transform_2(%arg0: i32, %arg1: i32) -> (i32, i32) {
    %c0_i32 = arith.constant 0 : i32
    %c0_i32_0 = arith.constant 0 : i32
    %c0_i32_1 = arith.constant 0 : i32
    return %c0_i32, %c0_i32_0 : i32, i32
  }
  func.func @transform_3(%arg0: i32, %arg1: i32) -> (i32, i32) {
    %c0_i32 = arith.constant 0 : i32
    %c0_i32_0 = arith.constant 0 : i32
    %c0_i32_1 = arith.constant 0 : i32
    return %c0_i32, %c0_i32_0 : i32, i32
  }
  func.func @transform_4(%arg0: i32, %arg1: i32) -> (i32, i32) {
    %c0_i32 = arith.constant 0 : i32
    %c0_i32_0 = arith.constant 0 : i32
    %c0_i32_1 = arith.constant 0 : i32
    return %c0_i32, %c0_i32_0 : i32, i32
  }
  func.func @transform_5(%arg0: i32, %arg1: i32) -> (i32, i32, i32) {
    %c0_i32 = arith.constant 0 : i32
    %c0_i32_0 = arith.constant 0 : i32
    return %arg0, %c0_i32, %arg1 : i32, i32, i32
  }
}

</mosaic_0001>

<llo_original>
// kernel: tpu_custom_call.1
$region0: #{tpu_custom_call.1}
  #allocation0 [shape = 'u32[]', space=smem, size = 0x4, offset = 0x4, fixed_abs, tag = 'smem constant byte address 0x4 - core index']
  #allocation1 [shape = 'u32[72,128]{1,0:T(1,128)}', space=vmem, size = 0x9000, scoped, tag = 'internal scratch']
  %s0 = inlined_call_operand.vmem [shape: bf16[2,8,7,128], index: 0, kind: input, shape index: {}]
  %s1 = inlined_call_operand.vmem [shape: bf16[16,7], index: 1, kind: input, shape index: {}]
  %s2 = inlined_call_operand.vmem [shape: f32[16,1], index: 2, kind: input, shape index: {}]
  %s3 = inlined_call_operand.vmem [shape: bf16[32,16], index: 3, kind: input, shape index: {}]
  %s4 = inlined_call_operand.vmem [shape: f32[32,1], index: 4, kind: input, shape index: {}]
  %s5 = inlined_call_operand.hbm [shape: f32[2,32,128], index: 5, kind: output, shape index: {}]
  %s6 = sld [smem:[#allocation0]]
  $region53: #{tpu_custom_call.1} parent=0
    _
  %s8 = ssub.s32 1, %s6
  %s9 = scalar_select 0, %s8, %s6
  $region1: #{tpu_custom_call.1} parent=0
    #allocation2 [shape = 'u8[32768]{0}', space=vmem, size = 0x8000, scoped, tag = 'output window, operand 0']
    #allocation3 [shape = 's32[2]{0}', space=sflag, size = 0x8, scoped, tag = 'scoped memory for tpu_custom_call.1']
    %10 = vsyncpa [#allocation3], 0
    %s11 = scalar_lea.sflag [#allocation3], 1
    %12 = vsyncpa %s11, 0
    loop: start=0, step=1, limit=4
    $region2: #{tpu_custom_call.1} parent=1 // loop_pre_header
      _
    $region3: #{tpu_custom_call.1} parent=1 // loop_header
      %s14 = sphi 0, %s18
      %p15 = scmp.ge.s32.totalorder %s14, 4
      %s21 = sphi 0, %s33
      %s22 = sphi 0, %s29
      %s23 = sphi 0, %s21
      %s24 = sphi 0, %s22
      %s25 = sphi 0, %s23
      %s26 = sphi 0, %s24
      %s38 = sphi 0, %s40
      %s41 = sphi 0, %s38
      %s42 = sphi 0, %s41
      %s58 = sphi 0, %s42
      %s62 = sphi 0, %s62
      %s64 = sphi 0, %s62
      %s65 = sphi 0, %s64
      %s79 = sphi 0, %s65
      %s83 = sphi 0, %s83
      %s85 = sphi 0, %s83
      %s86 = sphi 0, %s85
      %s100 = sphi 0, %s86
      %s104 = sphi 0, %s104
      %s106 = sphi 0, %s104
      %s107 = sphi 0, %s106
      %s121 = sphi 0, %s107
      %s125 = sphi 0, %s125
      %s127 = sphi 0, %s125
      %s128 = sphi 0, %s127
      %s142 = sphi 0, %s128
      %s150 = sphi 0, %s152
      %s153 = sphi 0, %s150
      %s154 = sphi 0, %s153
      %s170 = sphi 0, %s154
    $region4: #{tpu_custom_call.1} parent=1 // loop_header_branch
      %17 = sbr.rel (%p15) target = $region8
    $region5: #{tpu_custom_call.1} parent=1 // loop_body
      %s19 = ssub.s32 %s14, 1
      %s20 = ssub.s32 %s14, 2
      %s27 = sadd.s32 1, %s22
      %p28 = scmp.ge.s32.totalorder %s27, 1
      %s29 = scalar_select %p28, 0, %s27
      %s30 = sadd.s32 1, %s21
      %s31 = scalar_select %p28, %s30, %s21
      %p32 = scmp.ge.s32.totalorder %s31, 2
      %s33 = scalar_select %p32, 0, %s31
      %s34 = ssub.s32 %s21, %s33
      %s35 = ssub.s32 %s22, %s29
      %s36 = sor.u32 %s34, %s35
      %p37 = scmp.eq.s32.totalorder %s36, 0
      %s39 = sadd.s32 %s38, 1
      %s40 = scalar_select %p37, %s38, %s39
      %p43 = pneg %p37
      %p44 = scmp.eq.s32.totalorder %s14, 1
      %p45 = por %p43, %p44
      %p46 = scmp.ne.s32.totalorder %s38, %s41
      %p47 = scmp.eq.s32.totalorder %s14, 0
      %p48 = por %p46, %p47
      %p49 = scmp.ne.s32.totalorder %s38, %s41
      %p50 = scmp.eq.s32.totalorder %s19, 1
      %p51 = por %p49, %p50
      %p52 = scmp.ne.s32.totalorder %s41, %s42
      %p53 = scmp.eq.s32.totalorder %s19, 0
      %p54 = por %p52, %p53
      %p55 = scmp.ne.s32.totalorder %s41, %s42
      %p56 = scmp.eq.s32.totalorder %s20, 1
      %p57 = por %p55, %p56
      %p59 = scmp.ne.s32.totalorder %s42, %s58
      %p60 = scmp.eq.s32.totalorder %s20, 0
      %p61 = por %p59, %p60
      %s63 = sadd.s32 %s62, 1
      %p66 = scmp.eq.s32.totalorder %s14, 1
      %p67 = scmp.ne.s32.totalorder %s62, %s64
      %p68 = scmp.eq.s32.totalorder %s14, 0
      %p69 = por %p67, %p68
      %p70 = scmp.ne.s32.totalorder %s62, %s64
      %p71 = scmp.eq.s32.totalorder %s19, 1
      %p72 = por %p70, %p71
      %p73 = scmp.ne.s32.totalorder %s64, %s65
      %p74 = scmp.eq.s32.totalorder %s19, 0
      %p75 = por %p73, %p74
      %p76 = scmp.ne.s32.totalorder %s64, %s65
      %p77 = scmp.eq.s32.totalorder %s20, 1
      %p78 = por %p76, %p77
      %p80 = scmp.ne.s32.totalorder %s65, %s79
      %p81 = scmp.eq.s32.totalorder %s20, 0
      %p82 = por %p80, %p81
      %s84 = sadd.s32 %s83, 1
      %p87 = scmp.eq.s32.totalorder %s14, 1
      %p88 = scmp.ne.s32.totalorder %s83, %s85
      %p89 = scmp.eq.s32.totalorder %s14, 0
      %p90 = por %p88, %p89
      %p91 = scmp.ne.s32.totalorder %s83, %s85
      %p92 = scmp.eq.s32.totalorder %s19, 1
      %p93 = por %p91, %p92
      %p94 = scmp.ne.s32.totalorder %s85, %s86
      %p95 = scmp.eq.s32.totalorder %s19, 0
      %p96 = por %p94, %p95
      %p97 = scmp.ne.s32.totalorder %s85, %s86
      %p98 = scmp.eq.s32.totalorder %s20, 1
      %p99 = por %p97, %p98
      %p101 = scmp.ne.s32.totalorder %s86, %s100
      %p102 = scmp.eq.s32.totalorder %s20, 0
      %p103 = por %p101, %p102
      %s105 = sadd.s32 %s104, 1
      %p108 = scmp.eq.s32.totalorder %s14, 1
      %p109 = scmp.ne.s32.totalorder %s104, %s106
      %p110 = scmp.eq.s32.totalorder %s14, 0
      %p111 = por %p109, %p110
      %p112 = scmp.ne.s32.totalorder %s104, %s106
      %p113 = scmp.eq.s32.totalorder %s19, 1
      %p114 = por %p112, %p113
      %p115 = scmp.ne.s32.totalorder %s106, %s107
      %p116 = scmp.eq.s32.totalorder %s19, 0
      %p117 = por %p115, %p116
      %p118 = scmp.ne.s32.totalorder %s106, %s107
      %p119 = scmp.eq.s32.totalorder %s20, 1
      %p120 = por %p118, %p119
      %p122 = scmp.ne.s32.totalorder %s107, %s121
      %p123 = scmp.eq.s32.totalorder %s20, 0
      %p124 = por %p122, %p123
      %s126 = sadd.s32 %s125, 1
      %p129 = scmp.eq.s32.totalorder %s14, 1
      %p130 = scmp.ne.s32.totalorder %s125, %s127
      %p131 = scmp.eq.s32.totalorder %s14, 0
      %p132 = por %p130, %p131
      %p133 = scmp.ne.s32.totalorder %s125, %s127
      %p134 = scmp.eq.s32.totalorder %s19, 1
      %p135 = por %p133, %p134
      %p136 = scmp.ne.s32.totalorder %s127, %s128
      %p137 = scmp.eq.s32.totalorder %s19, 0
      %p138 = por %p136, %p137
      %p139 = scmp.ne.s32.totalorder %s127, %s128
      %p140 = scmp.eq.s32.totalorder %s20, 1
      %p141 = por %p139, %p140
      %p143 = scmp.ne.s32.totalorder %s128, %s142
      %p144 = scmp.eq.s32.totalorder %s20, 0
      %p145 = por %p143, %p144
      %s146 = ssub.s32 %s21, %s33
      %s147 = ssub.s32 %s22, %s29
      %s148 = sor.u32 %s146, %s147
      %p149 = scmp.eq.s32.totalorder %s148, 0
      %s151 = sadd.s32 %s150, 1
      %s152 = scalar_select %p149, %s150, %s151
      %p155 = pneg %p149
      %p156 = scmp.eq.s32.totalorder %s14, 1
      %p157 = por %p155, %p156
      %p158 = scmp.ne.s32.totalorder %s150, %s153
      %p159 = scmp.eq.s32.totalorder %s14, 0
      %p160 = por %p158, %p159
      %p161 = scmp.ne.s32.totalorder %s150, %s153
      %p162 = scmp.eq.s32.totalorder %s19, 1
      %p163 = por %p161, %p162
      %p164 = scmp.ne.s32.totalorder %s153, %s154
      %p165 = scmp.eq.s32.totalorder %s19, 0
      %p166 = por %p164, %p165
      %p167 = scmp.ne.s32.totalorder %s153, %s154
      %p168 = scmp.eq.s32.totalorder %s20, 1
      %p169 = por %p167, %p168
      %p171 = scmp.ne.s32.totalorder %s154, %s170
      %p172 = scmp.eq.s32.totalorder %s20, 0
      %p173 = por %p171, %p172
      %p174 = scmp.le.s32.totalorder 1, %s14
      %p175 = scmp.lt.s32.totalorder %s14, 3
      %p176 = pnand %p174, %p175
      %p177 = pneg %p176
      // Predicated region
      $region9: #{tpu_custom_call.1} parent=5 // pred_check
        _
      $region10: #{tpu_custom_call.1} parent=5 // pred_check_branch
        %179 = sbr.rel (%p176) target = $region12
      $region11: #{tpu_custom_call.1} parent=5 // pred_region
        %s180 = ssub.s32 %s14, 1
        // Predicated region
        $region13: #{tpu_custom_call.1} parent=11 // pred_check
          %p181 = pneg %p75
        $region14: #{tpu_custom_call.1} parent=11 // pred_check_branch
          %183 = sbr.rel (%p181) target = $region16
        $region15: #{tpu_custom_call.1} parent=11 // pred_region
          _
        $region16: #{tpu_custom_call.1} parent=11 // pred_fallthru
          _
        // Predicated region
        $region17: #{tpu_custom_call.1} parent=11 // pred_check
          %p184 = pneg %p96
        $region18: #{tpu_custom_call.1} parent=11 // pred_check_branch
          %186 = sbr.rel (%p184) target = $region20
        $region19: #{tpu_custom_call.1} parent=11 // pred_region
          _
        $region20: #{tpu_custom_call.1} parent=11 // pred_fallthru
          _
        // Predicated region
        $region21: #{tpu_custom_call.1} parent=11 // pred_check
          %p187 = pneg %p117
        $region22: #{tpu_custom_call.1} parent=11 // pred_check_branch
          %189 = sbr.rel (%p187) target = $region24
        $region23: #{tpu_custom_call.1} parent=11 // pred_region
          _
        $region24: #{tpu_custom_call.1} parent=11 // pred_fallthru
          _
        // Predicated region
        $region25: #{tpu_custom_call.1} parent=11 // pred_check
          %p190 = pneg %p138
        $region26: #{tpu_custom_call.1} parent=11 // pred_check_branch
          %192 = sbr.rel (%p190) target = $region28
        $region27: #{tpu_custom_call.1} parent=11 // pred_region
          _
        $region28: #{tpu_custom_call.1} parent=11 // pred_fallthru
          _
      $region12: #{tpu_custom_call.1} parent=5 // pred_fallthru
        _
      %p193 = scmp.lt.s32.totalorder %s14, 2
      // Predicated region
      $region29: #{tpu_custom_call.1} parent=5 // pred_check
        %p194 = pneg %p193
      $region30: #{tpu_custom_call.1} parent=5 // pred_check_branch
        %196 = sbr.rel (%p194) target = $region32
      $region31: #{tpu_custom_call.1} parent=5 // pred_region
        // Predicated region
        $region33: #{tpu_custom_call.1} parent=31 // pred_check
          %p197 = pneg %p48
        $region34: #{tpu_custom_call.1} parent=31 // pred_check_branch
          %199 = sbr.rel (%p197) target = $region36
        $region35: #{tpu_custom_call.1} parent=31 // pred_region
          %p200 = scmp.lt.s32.totalorder %s21, 1
          %s201 = scalar_select %p200, %s21, 1
          %p202 = scmp.lt.s32.totalorder %s22, 0
          %s203 = scalar_select %p202, %s22, 0
          %s204 = smul.addr %s201, 8
          %s205 = sadd.s32 %s203, %s204
          %s206 = smul.addr %s205, 4
          %s207 = scalar_lea.vmem %s0, %s206
        $region36: #{tpu_custom_call.1} parent=31 // pred_fallthru
          _
      $region32: #{tpu_custom_call.1} parent=5 // pred_fallthru
        _
      %p208 = scmp.le.s32.totalorder 1, %s14
      %p209 = scmp.lt.s32.totalorder %s14, 3
      %p210 = pnand %p208, %p209
      %p211 = pneg %p210
      // Predicated region
      $region37: #{tpu_custom_call.1} parent=5 // pred_check
        _
      $region38: #{tpu_custom_call.1} parent=5 // pred_check_branch
        %213 = sbr.rel (%p210) target = $region40
      $region39: #{tpu_custom_call.1} parent=5 // pred_region
        %s214 = ssub.s32 %s14, 1
        %p215 = scmp.lt.s32.totalorder %s23, 1
        %s216 = scalar_select %p215, %s23, 1
        %p217 = scmp.lt.s32.totalorder %s24, 0
        %s218 = scalar_select %p217, %s24, 0
        %s219 = smul.addr %s216, 8
        %s220 = sadd.s32 %s218, %s219
        %s221 = smul.addr %s220, 4
        %s222 = scalar_lea.vmem %s0, %s221
        %p223 = pneg %p54
        %p224 = pneg %p51
        %p225 = pneg %p75
        %p226 = pneg %p72
        %p227 = pneg %p96
        %p228 = pneg %p93
        %p229 = pneg %p117
        %p230 = pneg %p114
        %p231 = pneg %p138
        %p232 = pneg %p135
        %p233 = pneg %p166
        %p234 = pneg %p163
        %s235 = sand.u32 %s153, 1
        %s236 = scalar_lea.sflag [#allocation3], %s235
        %s237 = sand.u32 %s153, 1
        %s238 = smul.addr %s237, 32
        %s239 = scalar_lea.vmem [#allocation2], %s238
        %p240 = scmp.lt.s32.totalorder %s23, 1
        %s241 = scalar_select %p240, %s23, 1
        %p242 = scmp.lt.s32.totalorder %s24, 0
        %s243 = scalar_select %p242, %s24, 0
        %s244 = smul.addr %s241, 8
        %s245 = sadd.s32 %s243, %s244
        %s246 = smul.addr %s245, 4
        %s247 = scalar_lea.vmem %s0, %s246
        %v249 = vld [vmem:[%s1] sm:$0xf]
        %v250 = vld [vmem:[%s1 + $0x4] sm:$0xf]
        %v251 = vld [vmem:[%s3] sm:$0xf]
        %v252 = vld [vmem:[%s3 + $0x4] sm:$0xf]
        %v253 = vld [vmem:[%s3 + $0x8] sm:$0xf]
        %v254 = vld [vmem:[%s3 + $0xc] sm:$0xf]
        %v255 = vld [vmem:[%s2] sm:$0xff]
        %v256 = vld [vmem:[%s2 + $0x8] sm:$0xff]
        %v257 = vld [vmem:[%s4] sm:$0xff]
        %v258 = vld [vmem:[%s4 + $0x8] sm:$0xff]
        %v259 = vld [vmem:[%s4 + $0x10] sm:$0xff]
        %v260 = vld [vmem:[%s4 + $0x18] sm:$0xff]
        %v261 = vld [vmem:[%s247] sm:$0xf]
        %263 = vset.pattern.permute.xlu0 0
        %264 = vperm.xlu0 %263, %v255
        %v265 = vpop.permute.xlu0 %264
        %268 = vset.pattern.permute.xlu0 0
        %269 = vperm.xlu0 %268, %v256
        %v270 = vpop.permute.xlu0 %269
        %v274 = vunpack.c.l.b16 %v249
        %v275 = vunpack.c.l.b16 %v250
        %v276 = vpack.c.b16 %v275, %v274
        %vm277 = vcmask 56320
        %v279 = vsel %vm277, %v276, 0
        %vm281 = vcmask 1042432
        %vm282 = vcmask 1043456
        %v283 = vsel %vm281, 4294967295, 65535
        %v284 = vsel %vm282, %v283, 0
        %v286 = vand.u32 %v261, %v284
        %288 = vmatpush.bf16.msra.mxu0 0
        %289 = vmatpush.bf16.msra.mxu0 0
        %290 = vmatpush.bf16.msra.mxu0 0
        %291 = vmatpush.bf16.msra.mxu0 0
        %292 = vmatpush.bf16.msra.mxu0 0
        %293 = vmatpush.bf16.msra.mxu0 0
        %294 = vmatpush.bf16.msra.mxu0 0
        %295 = vmatpush.bf16.msra.mxu0 %v286
        %296 = vmatmul.bf16.gmra.mxu0 %v279
        %v297 = vpop.f32.mrf.mxu0
        %v298 = vadd.f32 %v265, %v297
        %v299 = vpop.f32.mrf.mxu0
        %v300 = vadd.f32 %v270, %v299
        %301 = vdwg.mxu0
        %v302 = vmax.f32 %v298, 0.0
        %v303 = vmax.f32 %v300, 0.0
        %v304 = vpack.c.bf16 %v303, %v302
        %306 = vset.pattern.permute.xlu0 0
        %307 = vperm.xlu0 %306, %v257
        %v308 = vpop.permute.xlu0 %307
        %311 = vset.pattern.permute.xlu0 0
        %312 = vperm.xlu0 %311, %v258
        %v313 = vpop.permute.xlu0 %312
        %316 = vset.pattern.permute.xlu0 0
        %317 = vperm.xlu0 %316, %v259
        %v318 = vpop.permute.xlu0 %317
        %321 = vset.pattern.permute.xlu0 0
        %322 = vperm.xlu0 %321, %v260
        %v323 = vpop.permute.xlu0 %322
        %v329 = vunpack.c.l.b16 %v251
        %v330 = vunpack.c.l.b16 %v252
        %v331 = vunpack.c.l.b16 %v253
        %v332 = vunpack.c.l.b16 %v254
        %v333 = vpack.c.b16 %v330, %v329
        %v334 = vpack.c.b16 %v332, %v331
        %vm335 = vcmask 130048
        %v337 = vsel %vm335, %v333, 0
        %v340 = vsel %vm335, %v334, 0
        %342 = vmatpush.bf16.msra.mxu0 0
        %343 = vmatpush.bf16.msra.mxu0 0
        %344 = vmatpush.bf16.msra.mxu0 0
        %345 = vmatpush.bf16.msra.mxu0 0
        %346 = vmatpush.bf16.msra.mxu0 0
        %347 = vmatpush.bf16.msra.mxu0 0
        %348 = vmatpush.bf16.msra.mxu0 0
        %349 = vmatpush.bf16.msra.mxu0 %v304
        %350 = vmatmul.bf16.gmra.mxu0 %v337
        %v351 = vpop.f32.mrf.mxu0
        %v352 = vadd.f32 %v308, %v351
        %v353 = vpop.f32.mrf.mxu0
        %v354 = vadd.f32 %v313, %v353
        %355 = vmatmul.bf16.gmra.mxu0 %v340
        %v356 = vpop.f32.mrf.mxu0
        %v357 = vadd.f32 %v318, %v356
        %v358 = vpop.f32.mrf.mxu0
        %v359 = vadd.f32 %v323, %v358
        %360 = vdwg.mxu0
        %v361 = vmax.f32 %v352, 0.0
        %v362 = vmax.f32 %v354, 0.0
        %v363 = vmax.f32 %v357, 0.0
        %v364 = vmax.f32 %v359, 0.0
        %s365 = scalar_lea.vmem %s247, 4
        %v366 = vld [vmem:[%s365] sm:$0xf]
        %v368 = vand.u32 %v366, %v284
        %370 = vmatpush.bf16.msra.mxu0 0
        %371 = vmatpush.bf16.msra.mxu0 0
        %372 = vmatpush.bf16.msra.mxu0 0
        %373 = vmatpush.bf16.msra.mxu0 0
        %374 = vmatpush.bf16.msra.mxu0 0
        %375 = vmatpush.bf16.msra.mxu0 0
        %376 = vmatpush.bf16.msra.mxu0 0
        %377 = vmatpush.bf16.msra.mxu0 %v368
        %378 = vmatmul.bf16.gmra.mxu0 %v279
        %v379 = vpop.f32.mrf.mxu0
        %v380 = vadd.f32 %v265, %v379
        %v381 = vpop.f32.mrf.mxu0
        %v382 = vadd.f32 %v270, %v381
        %383 = vdwg.mxu0
        %v384 = vmax.f32 %v380, 0.0
        %v385 = vmax.f32 %v382, 0.0
        %v386 = vpack.c.bf16 %v385, %v384
        %387 = vmatpush.bf16.msra.mxu0 0
        %388 = vmatpush.bf16.msra.mxu0 0
        %389 = vmatpush.bf16.msra.mxu0 0
        %390 = vmatpush.bf16.msra.mxu0 0
        %391 = vmatpush.bf16.msra.mxu0 0
        %392 = vmatpush.bf16.msra.mxu0 0
        %393 = vmatpush.bf16.msra.mxu0 0
        %394 = vmatpush.bf16.msra.mxu0 %v386
        %395 = vmatmul.bf16.gmra.mxu0 %v337
        %v396 = vpop.f32.mrf.mxu0
        %v397 = vadd.f32 %v308, %v396
        %v398 = vpop.f32.mrf.mxu0
        %v399 = vadd.f32 %v313, %v398
        %400 = vmatmul.bf16.gmra.mxu0 %v340
        %v401 = vpop.f32.mrf.mxu0
        %v402 = vadd.f32 %v318, %v401
        %v403 = vpop.f32.mrf.mxu0
        %v404 = vadd.f32 %v323, %v403
        %405 = vdwg.mxu0
        %v406 = vmax.f32 %v397, 0.0
        %v407 = vmax.f32 %v399, 0.0
        %v408 = vmax.f32 %v402, 0.0
        %v409 = vmax.f32 %v404, 0.0
        %v410 = vmax.f32 %v361, %v406
        %v411 = vmax.f32 %v362, %v407
        %v412 = vmax.f32 %v363, %v408
        %v413 = vmax.f32 %v364, %v409
        %s414 = scalar_lea.vmem %s247, 8
        %v415 = vld [vmem:[%s414] sm:$0xf]
        %v417 = vand.u32 %v415, %v284
        %419 = vmatpush.bf16.msra.mxu0 0
        %420 = vmatpush.bf16.msra.mxu0 0
        %421 = vmatpush.bf16.msra.mxu0 0
        %422 = vmatpush.bf16.msra.mxu0 0
        %423 = vmatpush.bf16.msra.mxu0 0
        %424 = vmatpush.bf16.msra.mxu0 0
        %425 = vmatpush.bf16.msra.mxu0 0
        %426 = vmatpush.bf16.msra.mxu0 %v417
        %427 = vmatmul.bf16.gmra.mxu0 %v279
        %v428 = vpop.f32.mrf.mxu0
        %v429 = vadd.f32 %v265, %v428
        %v430 = vpop.f32.mrf.mxu0
        %v431 = vadd.f32 %v270, %v430
        %432 = vdwg.mxu0
        %v433 = vmax.f32 %v429, 0.0
        %v434 = vmax.f32 %v431, 0.0
        %v435 = vpack.c.bf16 %v434, %v433
        %436 = vmatpush.bf16.msra.mxu0 0
        %437 = vmatpush.bf16.msra.mxu0 0
        %438 = vmatpush.bf16.msra.mxu0 0
        %439 = vmatpush.bf16.msra.mxu0 0
        %440 = vmatpush.bf16.msra.mxu0 0
        %441 = vmatpush.bf16.msra.mxu0 0
        %442 = vmatpush.bf16.msra.mxu0 0
        %443 = vmatpush.bf16.msra.mxu0 %v435
        %444 = vmatmul.bf16.gmra.mxu0 %v337
        %v445 = vpop.f32.mrf.mxu0
        %v446 = vadd.f32 %v308, %v445
        %v447 = vpop.f32.mrf.mxu0
        %v448 = vadd.f32 %v313, %v447
        %449 = vmatmul.bf16.gmra.mxu0 %v340
        %v450 = vpop.f32.mrf.mxu0
        %v451 = vadd.f32 %v318, %v450
        %v452 = vpop.f32.mrf.mxu0
        %v453 = vadd.f32 %v323, %v452
        %454 = vdwg.mxu0
        %v455 = vmax.f32 %v446, 0.0
        %v456 = vmax.f32 %v448, 0.0
        %v457 = vmax.f32 %v451, 0.0
        %v458 = vmax.f32 %v453, 0.0
        %v459 = vmax.f32 %v410, %v455
        %v460 = vmax.f32 %v411, %v456
        %v461 = vmax.f32 %v412, %v457
        %v462 = vmax.f32 %v413, %v458
        %s463 = scalar_lea.vmem %s247, 12
        %v464 = vld [vmem:[%s463] sm:$0xf]
        %v466 = vand.u32 %v464, %v284
        %468 = vmatpush.bf16.msra.mxu0 0
        %469 = vmatpush.bf16.msra.mxu0 0
        %470 = vmatpush.bf16.msra.mxu0 0
        %471 = vmatpush.bf16.msra.mxu0 0
        %472 = vmatpush.bf16.msra.mxu0 0
        %473 = vmatpush.bf16.msra.mxu0 0
        %474 = vmatpush.bf16.msra.mxu0 0
        %475 = vmatpush.bf16.msra.mxu0 %v466
        %476 = vmatmul.bf16.gmra.mxu0 %v279
        %v477 = vpop.f32.mrf.mxu0
        %v478 = vadd.f32 %v265, %v477
        %v479 = vpop.f32.mrf.mxu0
        %v480 = vadd.f32 %v270, %v479
        %481 = vdwg.mxu0
        %v482 = vmax.f32 %v478, 0.0
        %v483 = vmax.f32 %v480, 0.0
        %v484 = vpack.c.bf16 %v483, %v482
        %485 = vmatpush.bf16.msra.mxu0 0
        %486 = vmatpush.bf16.msra.mxu0 0
        %487 = vmatpush.bf16.msra.mxu0 0
        %488 = vmatpush.bf16.msra.mxu0 0
        %489 = vmatpush.bf16.msra.mxu0 0
        %490 = vmatpush.bf16.msra.mxu0 0
        %491 = vmatpush.bf16.msra.mxu0 0
        %492 = vmatpush.bf16.msra.mxu0 %v484
        %493 = vmatmul.bf16.gmra.mxu0 %v337
        %v494 = vpop.f32.mrf.mxu0
        %v495 = vadd.f32 %v308, %v494
        %v496 = vpop.f32.mrf.mxu0
        %v497 = vadd.f32 %v313, %v496
        %498 = vmatmul.bf16.gmra.mxu0 %v340
        %v499 = vpop.f32.mrf.mxu0
        %v500 = vadd.f32 %v318, %v499
        %v501 = vpop.f32.mrf.mxu0
        %v502 = vadd.f32 %v323, %v501
        %503 = vdwg.mxu0
        %v504 = vmax.f32 %v495, 0.0
        %v505 = vmax.f32 %v497, 0.0
        %v506 = vmax.f32 %v500, 0.0
        %v507 = vmax.f32 %v502, 0.0
        %v508 = vmax.f32 %v459, %v504
        %v509 = vmax.f32 %v460, %v505
        %v510 = vmax.f32 %v461, %v506
        %v511 = vmax.f32 %v462, %v507
        %s512 = scalar_lea.vmem %s247, 16
        %v513 = vld [vmem:[%s512] sm:$0xf]
        %v515 = vand.u32 %v513, %v284
        %517 = vmatpush.bf16.msra.mxu0 0
        %518 = vmatpush.bf16.msra.mxu0 0
        %519 = vmatpush.bf16.msra.mxu0 0
        %520 = vmatpush.bf16.msra.mxu0 0
        %521 = vmatpush.bf16.msra.mxu0 0
        %522 = vmatpush.bf16.msra.mxu0 0
        %523 = vmatpush.bf16.msra.mxu0 0
        %524 = vmatpush.bf16.msra.mxu0 %v515
        %525 = vmatmul.bf16.gmra.mxu0 %v279
        %v526 = vpop.f32.mrf.mxu0
        %v527 = vadd.f32 %v265, %v526
        %v528 = vpop.f32.mrf.mxu0
        %v529 = vadd.f32 %v270, %v528
        %530 = vdwg.mxu0
        %v531 = vmax.f32 %v527, 0.0
        %v532 = vmax.f32 %v529, 0.0
        %v533 = vpack.c.bf16 %v532, %v531
        %534 = vmatpush.bf16.msra.mxu0 0
        %535 = vmatpush.bf16.msra.mxu0 0
        %536 = vmatpush.bf16.msra.mxu0 0
        %537 = vmatpush.bf16.msra.mxu0 0
        %538 = vmatpush.bf16.msra.mxu0 0
        %539 = vmatpush.bf16.msra.mxu0 0
        %540 = vmatpush.bf16.msra.mxu0 0
        %541 = vmatpush.bf16.msra.mxu0 %v533
        %542 = vmatmul.bf16.gmra.mxu0 %v337
        %v543 = vpop.f32.mrf.mxu0
        %v544 = vadd.f32 %v308, %v543
        %v545 = vpop.f32.mrf.mxu0
        %v546 = vadd.f32 %v313, %v545
        %547 = vmatmul.bf16.gmra.mxu0 %v340
        %v548 = vpop.f32.mrf.mxu0
        %v549 = vadd.f32 %v318, %v548
        %v550 = vpop.f32.mrf.mxu0
        %v551 = vadd.f32 %v323, %v550
        %552 = vdwg.mxu0
        %v553 = vmax.f32 %v544, 0.0
        %v554 = vmax.f32 %v546, 0.0
        %v555 = vmax.f32 %v549, 0.0
        %v556 = vmax.f32 %v551, 0.0
        %v557 = vmax.f32 %v508, %v553
        %v558 = vmax.f32 %v509, %v554
        %v559 = vmax.f32 %v510, %v555
        %v560 = vmax.f32 %v511, %v556
        %s561 = scalar_lea.vmem %s247, 20
        %v562 = vld [vmem:[%s561] sm:$0xf]
        %v564 = vand.u32 %v562, %v284
        %566 = vmatpush.bf16.msra.mxu0 0
        %567 = vmatpush.bf16.msra.mxu0 0
        %568 = vmatpush.bf16.msra.mxu0 0
        %569 = vmatpush.bf16.msra.mxu0 0
        %570 = vmatpush.bf16.msra.mxu0 0
        %571 = vmatpush.bf16.msra.mxu0 0
        %572 = vmatpush.bf16.msra.mxu0 0
        %573 = vmatpush.bf16.msra.mxu0 %v564
        %574 = vmatmul.bf16.gmra.mxu0 %v279
        %v575 = vpop.f32.mrf.mxu0
        %v576 = vadd.f32 %v265, %v575
        %v577 = vpop.f32.mrf.mxu0
        %v578 = vadd.f32 %v270, %v577
        %579 = vdwg.mxu0
        %v580 = vmax.f32 %v576, 0.0
        %v581 = vmax.f32 %v578, 0.0
        %v582 = vpack.c.bf16 %v581, %v580
        %583 = vmatpush.bf16.msra.mxu0 0
        %584 = vmatpush.bf16.msra.mxu0 0
        %585 = vmatpush.bf16.msra.mxu0 0
        %586 = vmatpush.bf16.msra.mxu0 0
        %587 = vmatpush.bf16.msra.mxu0 0
        %588 = vmatpush.bf16.msra.mxu0 0
        %589 = vmatpush.bf16.msra.mxu0 0
        %590 = vmatpush.bf16.msra.mxu0 %v582
        %591 = vmatmul.bf16.gmra.mxu0 %v337
        %v592 = vpop.f32.mrf.mxu0
        %v593 = vadd.f32 %v308, %v592
        %v594 = vpop.f32.mrf.mxu0
        %v595 = vadd.f32 %v313, %v594
        %596 = vmatmul.bf16.gmra.mxu0 %v340
        %v597 = vpop.f32.mrf.mxu0
        %v598 = vadd.f32 %v318, %v597
        %v599 = vpop.f32.mrf.mxu0
        %v600 = vadd.f32 %v323, %v599
        %601 = vdwg.mxu0
        %v602 = vmax.f32 %v593, 0.0
        %v603 = vmax.f32 %v595, 0.0
        %v604 = vmax.f32 %v598, 0.0
        %v605 = vmax.f32 %v600, 0.0
        %v606 = vmax.f32 %v557, %v602
        %v607 = vmax.f32 %v558, %v603
        %v608 = vmax.f32 %v559, %v604
        %v609 = vmax.f32 %v560, %v605
        %s610 = scalar_lea.vmem %s247, 24
        %v611 = vld [vmem:[%s610] sm:$0xf]
        %v613 = vand.u32 %v611, %v284
        %615 = vmatpush.bf16.msra.mxu0 0
        %616 = vmatpush.bf16.msra.mxu0 0
        %617 = vmatpush.bf16.msra.mxu0 0
        %618 = vmatpush.bf16.msra.mxu0 0
        %619 = vmatpush.bf16.msra.mxu0 0
        %620 = vmatpush.bf16.msra.mxu0 0
        %621 = vmatpush.bf16.msra.mxu0 0
        %622 = vmatpush.bf16.msra.mxu0 %v613
        %623 = vmatmul.bf16.gmra.mxu0 %v279
        %v624 = vpop.f32.mrf.mxu0
        %v625 = vadd.f32 %v265, %v624
        %v626 = vpop.f32.mrf.mxu0
        %v627 = vadd.f32 %v270, %v626
        %628 = vdwg.mxu0
        %v629 = vmax.f32 %v625, 0.0
        %v630 = vmax.f32 %v627, 0.0
        %v631 = vpack.c.bf16 %v630, %v629
        %632 = vmatpush.bf16.msra.mxu0 0
        %633 = vmatpush.bf16.msra.mxu0 0
        %634 = vmatpush.bf16.msra.mxu0 0
        %635 = vmatpush.bf16.msra.mxu0 0
        %636 = vmatpush.bf16.msra.mxu0 0
        %637 = vmatpush.bf16.msra.mxu0 0
        %638 = vmatpush.bf16.msra.mxu0 0
        %639 = vmatpush.bf16.msra.mxu0 %v631
        %640 = vmatmul.bf16.gmra.mxu0 %v337
        %v641 = vpop.f32.mrf.mxu0
        %v642 = vadd.f32 %v308, %v641
        %v643 = vpop.f32.mrf.mxu0
        %v644 = vadd.f32 %v313, %v643
        %645 = vmatmul.bf16.gmra.mxu0 %v340
        %v646 = vpop.f32.mrf.mxu0
        %v647 = vadd.f32 %v318, %v646
        %v648 = vpop.f32.mrf.mxu0
        %v649 = vadd.f32 %v323, %v648
        %650 = vdwg.mxu0
        %v651 = vmax.f32 %v642, 0.0
        %v652 = vmax.f32 %v644, 0.0
        %v653 = vmax.f32 %v647, 0.0
        %v654 = vmax.f32 %v649, 0.0
        %v655 = vmax.f32 %v606, %v651
        %v656 = vmax.f32 %v607, %v652
        %v657 = vmax.f32 %v608, %v653
        %v658 = vmax.f32 %v609, %v654
        %s659 = scalar_lea.vmem %s247, 28
        %v660 = vld [vmem:[%s659] sm:$0xf]
        %v662 = vand.u32 %v660, %v284
        %664 = vmatpush.bf16.msra.mxu0 0
        %665 = vmatpush.bf16.msra.mxu0 0
        %666 = vmatpush.bf16.msra.mxu0 0
        %667 = vmatpush.bf16.msra.mxu0 0
        %668 = vmatpush.bf16.msra.mxu0 0
        %669 = vmatpush.bf16.msra.mxu0 0
        %670 = vmatpush.bf16.msra.mxu0 0
        %671 = vmatpush.bf16.msra.mxu0 %v662
        %672 = vmatmul.bf16.gmra.mxu0 %v279
        %v673 = vpop.f32.mrf.mxu0
        %v674 = vadd.f32 %v265, %v673
        %v675 = vpop.f32.mrf.mxu0
        %v676 = vadd.f32 %v270, %v675
        %677 = vdwg.mxu0
        %v678 = vmax.f32 %v674, 0.0
        %v679 = vmax.f32 %v676, 0.0
        %v680 = vpack.c.bf16 %v679, %v678
        %681 = vmatpush.bf16.msra.mxu0 0
        %682 = vmatpush.bf16.msra.mxu0 0
        %683 = vmatpush.bf16.msra.mxu0 0
        %684 = vmatpush.bf16.msra.mxu0 0
        %685 = vmatpush.bf16.msra.mxu0 0
        %686 = vmatpush.bf16.msra.mxu0 0
        %687 = vmatpush.bf16.msra.mxu0 0
        %688 = vmatpush.bf16.msra.mxu0 %v680
        %689 = vmatmul.bf16.gmra.mxu0 %v337
        %v690 = vpop.f32.mrf.mxu0
        %v691 = vadd.f32 %v308, %v690
        %v692 = vpop.f32.mrf.mxu0
        %v693 = vadd.f32 %v313, %v692
        %694 = vmatmul.bf16.gmra.mxu0 %v340
        %v695 = vpop.f32.mrf.mxu0
        %v696 = vadd.f32 %v318, %v695
        %v697 = vpop.f32.mrf.mxu0
        %v698 = vadd.f32 %v323, %v697
        %699 = vdwg.mxu0
        %v700 = vmax.f32 %v691, 0.0
        %v701 = vmax.f32 %v693, 0.0
        %v702 = vmax.f32 %v696, 0.0
        %v703 = vmax.f32 %v698, 0.0
        %v704 = vmax.f32 %v655, %v700
        %v705 = vmax.f32 %v656, %v701
        %v706 = vmax.f32 %v657, %v702
        %v707 = vmax.f32 %v658, %v703
        %708 = vst [vmem:[%s239] sm:$0xff] %v704
        %709 = vst [vmem:[%s239 + $0x8] sm:$0xff] %v705
        %710 = vst [vmem:[%s239 + $0x10] sm:$0xff] %v706
        %711 = vst [vmem:[%s239 + $0x18] sm:$0xff] %v707
        %s712 = sand.u32 %s153, 1
        %s713 = scalar_lea.sflag [#allocation3], %s712
        %s714 = sand.u32 %s153, 1
        %s715 = smul.addr %s714, 32
        %s716 = scalar_lea.vmem [#allocation2], %s715
        // Predicated region
        $region41: #{tpu_custom_call.1} parent=39 // pred_check
          %p717 = pneg %p163
        $region42: #{tpu_custom_call.1} parent=39 // pred_check_branch
          %719 = sbr.rel (%p717) target = $region44
        $region43: #{tpu_custom_call.1} parent=39 // pred_region
          %721 = vsyncadd %s713, 0
          %s722 = smul.addr %s23, 4
          %s723 = sadd.s32 %s24, %s722
          %s724 = smul.addr %s723, 8
          %s725 = scalar_lea.hbm %s5, %s724
          %s726 = sshll.u32 %s716, 4
          %s727 = int_to_ptr.vmem [resolvable:$true] %s726
          %s728 = sshll.u32 %s725, 4
          %s729 = int_to_ptr.hbm [resolvable:$true] %s728
          %734 = dma.vmem_to_hbm [thread:$0]  %s727, 512, %s729, %s713, 128, 128, 8
        $region44: #{tpu_custom_call.1} parent=39 // pred_fallthru
          _
      $region40: #{tpu_custom_call.1} parent=5 // pred_fallthru
        _
      %p735 = scmp.le.s32.totalorder 2, %s14
      // Predicated region
      $region45: #{tpu_custom_call.1} parent=5 // pred_check
        %p736 = pneg %p735
      $region46: #{tpu_custom_call.1} parent=5 // pred_check_branch
        %738 = sbr.rel (%p736) target = $region48
      $region47: #{tpu_custom_call.1} parent=5 // pred_region
        %s739 = ssub.s32 %s14, 2
        // Predicated region
        $region49: #{tpu_custom_call.1} parent=47 // pred_check
          %p740 = pneg %p169
        $region50: #{tpu_custom_call.1} parent=47 // pred_check_branch
          %742 = sbr.rel (%p740) target = $region52
        $region51: #{tpu_custom_call.1} parent=47 // pred_region
          %s743 = sand.u32 %s154, 1
          %s744 = scalar_lea.sflag [#allocation3], %s743
          %s745 = sand.u32 %s154, 1
          %s746 = smul.addr %s745, 32
          %s747 = scalar_lea.vmem [#allocation2], %s746
          %749 = dma.done %s744, 512
        $region52: #{tpu_custom_call.1} parent=47 // pred_fallthru
          _
      $region48: #{tpu_custom_call.1} parent=5 // pred_fallthru
        _
    $region6: #{tpu_custom_call.1} parent=1 // loop_footer
      %s18 = sadd.s32 1, %s14
    $region7: #{tpu_custom_call.1} parent=1 // loop_footer_branch
      %13 = sbr.rel target = $region3
    $region8: #{tpu_custom_call.1} parent=1 // loop_exit
      _
    %750 = vsyncpa [#allocation3], 1
    %s751 = scalar_lea.sflag [#allocation3], 1
    %752 = vsyncpa %s751, 1

</llo_original>
